<compile_context>
chip_gen: v6e
topology: v6e:2x2x1
jax: 0.10.0
libtpu: 0.0.40
codegen_flags: <defaults>
</compile_context>

<pallas_src>
import functools

import jax
import jax.numpy as jnp
from jax.experimental import pallas as pl
from jax.experimental.pallas import tpu as pltpu

LANE = 128  # lane-dense output padding target


def _round_up(x, m):
    return ((x + m - 1) // m) * m


def _cdiv(a, b):
    return -(-a // b)


def ddpg_actor_kernel(x_ref, w1_ref, w23_ref, b_ref, out_ref, *,
                      h1_dim, h2_dim, n_pad):
    # Layer 1: Linear + ReLU (bf16 x bf16 on MXU, f32 accumulation)
    x = x_ref[...].astype(jnp.bfloat16)
    h1 = jnp.dot(x, w1_ref[...], preferred_element_type=jnp.float32)
    h1 = jnp.maximum(h1 + b_ref[:, 0:h1_dim], 0.0)

    # Layer 2: Linear + ReLU (W2 is rows [0, h1_dim) of the W23 slab)
    w2 = w23_ref[0:h1_dim, 0:h2_dim]
    h2 = jnp.dot(h1.astype(jnp.bfloat16), w2,
                 preferred_element_type=jnp.float32)
    h2 = jnp.maximum(h2 + b_ref[:, h1_dim:h1_dim + h2_dim], 0.0)

    # Layer 3: Linear + Tanh (W3 is rows [h1_dim, h1_dim+h2_dim); output is
    # zero-padded to n_pad lane-dense columns, tanh(0)=0)
    w3 = w23_ref[h1_dim:h1_dim + h2_dim, 0:n_pad]
    y = jnp.dot(h2.astype(jnp.bfloat16), w3,
                preferred_element_type=jnp.float32)
    b3 = b_ref[:, h1_dim + h2_dim:h1_dim + h2_dim + n_pad]
    out_ref[...] = jnp.tanh(y + b3).astype(out_ref.dtype)


def init_params(key, n_inputs, n_actions, fc_units=(256, 128)):
    """PyTorch nn.Linear-style init: U(-1/sqrt(fan_in), 1/sqrt(fan_in)).
    Weights are stored as [in_features, out_features] (transpose of torch)."""
    dims = [n_inputs, fc_units[0], fc_units[1], n_actions]
    params = {}
    for i in range(3):
        fan_in, fan_out = dims[i], dims[i + 1]
        key, kw, kb = jax.random.split(key, 3)
        bound = 1.0 / jnp.sqrt(jnp.float32(fan_in))
        params[f"W{i+1}"] = jax.random.uniform(
            kw, (fan_in, fan_out), jnp.float32, -bound, bound)
        params[f"b{i+1}"] = jax.random.uniform(
            kb, (1, fan_out), jnp.float32, -bound, bound)
    return params


def prepare_params(params):
    """One-time (outside the hot path) packing:
      * W1 cast to bf16
      * W2 and (lane-padded) W3 concatenated into one bf16 slab
      * b1/b2/b3 concatenated into one f32 slab
    Returns (arrays, meta) where meta holds static Python ints."""
    n_actions = params["W3"].shape[1]
    n_inputs, h1_dim = params["W1"].shape
    h2_dim = params["W2"].shape[1]
    n_pad = _round_up(max(n_actions, LANE), LANE)
    cw = max(h2_dim, n_pad)

    w2p = jnp.zeros((h1_dim, cw), jnp.float32).at[:, :h2_dim].set(params["W2"])
    w3p = jnp.zeros((h2_dim, cw), jnp.float32).at[:, :n_actions].set(params["W3"])
    w23 = jnp.concatenate([w2p, w3p], axis=0).astype(jnp.bfloat16)

    bcat = jnp.zeros((1, h1_dim + h2_dim + n_pad), jnp.float32)
    bcat = bcat.at[:, :h1_dim].set(params["b1"])
    bcat = bcat.at[:, h1_dim:h1_dim + h2_dim].set(params["b2"])
    bcat = bcat.at[:, h1_dim + h2_dim:h1_dim + h2_dim + n_actions].set(
        params["b3"])

    arrays = {"W1": params["W1"].astype(jnp.bfloat16), "W23": w23, "B": bcat}
    meta = {"n_actions": n_actions, "h1_dim": h1_dim, "h2_dim": h2_dim,
            "n_pad": n_pad}
    return arrays, meta


def _select_batch_tiling(B, tb_max, min_tiles):
    """Pick (tile_rows, num_tiles).  Padding is at most tb-1 rows (never ~2x B).
    Tiles are multiples of 16 rows (fully packed bf16 sublanes); min_tiles>=2
    lets v7x shard the batch axis across both TensorCores."""
    if B <= 16:
        return _round_up(B, 8), 1
    num_tiles = max(_cdiv(B, tb_max), min_tiles)
    tb = _round_up(_cdiv(B, num_tiles), 16)
    return tb, num_tiles


@functools.partial(
    jax.jit,
    static_argnames=("n_actions", "h1_dim", "h2_dim", "n_pad",
                     "tb_max", "min_tiles", "full_output"))
def ddpg_actor_forward(state, arrays, *, n_actions, h1_dim, h2_dim, n_pad,
                       tb_max=1024, min_tiles=2, full_output=False):
    """state: [B, n_inputs] f32; (arrays, meta) from prepare_params."""
    w1, w23, bcat = arrays["W1"], arrays["W23"], arrays["B"]
    B, n_inputs = state.shape

    tb, num_tiles = _select_batch_tiling(B, tb_max, min_tiles)
    b_pad = tb * num_tiles
    if b_pad != B:                      # tiny remainder pad only
        state = jnp.pad(state, ((0, b_pad - B), (0, 0)))

    kernel = functools.partial(ddpg_actor_kernel,
                               h1_dim=h1_dim, h2_dim=h2_dim, n_pad=n_pad)

    # x / out streamed per batch tile; weight/bias slabs resident (index 0,0).
    in_specs = [
        pl.BlockSpec((tb, n_inputs), lambda i: (i, 0)),
        pl.BlockSpec(w1.shape, lambda i: (0, 0)),
        pl.BlockSpec(w23.shape, lambda i: (0, 0)),
        pl.BlockSpec(bcat.shape, lambda i: (0, 0)),
    ]
    out_spec = pl.BlockSpec((tb, n_pad), lambda i: (i, 0))

    flops = 2 * b_pad * (n_inputs * h1_dim + h1_dim * h2_dim + h2_dim * n_pad)
    param_bytes = sum(int(a.size) * a.dtype.itemsize for a in (w1, w23, bcat))
    bytes_accessed = (b_pad * n_inputs * 4      # x (f32)
                      + param_bytes             # bf16 weights + f32 biases
                      + b_pad * n_pad * 2)      # output (bf16)
    cost = pl.CostEstimate(flops=flops, transcendentals=b_pad * n_pad,
                           bytes_accessed=bytes_accessed)

    out = pl.pallas_call(
        kernel,
        out_shape=jax.ShapeDtypeStruct((b_pad, n_pad), jnp.bfloat16),
        grid=(num_tiles,),
        in_specs=in_specs,
        out_specs=out_spec,
        compiler_params=pltpu.CompilerParams(
            dimension_semantics=("parallel",)),
        cost_estimate=cost,
    )(state, w1, w23, bcat)

    if full_output:
        # Padded lane-dense slab; lets downstream skip the extra slice pass.
        return out
    return out[:B, :n_actions]


def reference_forward(state, params):
    """Pure-JAX reference matching the kernel's bf16-weight /
    bf16-activation-roundtrip / f32-accumulate numerics."""
    w1 = params["W1"].astype(jnp.bfloat16).astype(jnp.float32)
    w2 = params["W2"].astype(jnp.bfloat16).astype(jnp.float32)
    w3 = params["W3"].astype(jnp.bfloat16).astype(jnp.float32)
    x = state.astype(jnp.bfloat16).astype(jnp.float32)
    h1 = jnp.maximum(x @ w1 + params["b1"], 0.0)
    h1 = h1.astype(jnp.bfloat16).astype(jnp.float32)
    h2 = jnp.maximum(h1 @ w2 + params["b2"], 0.0)
    h2 = h2.astype(jnp.bfloat16).astype(jnp.float32)
    return jnp.tanh(h2 @ w3 + params["b3"])


if __name__ == "__main__":
    B = 8
    n_inputs = 32
    n_actions = 8

    key = jax.random.PRNGKey(0)
    key, k_state = jax.random.split(key)
    params = init_params(key, n_inputs, n_actions, fc_units=(256, 128))
    arrays, meta = prepare_params(params)
    state = jax.random.normal(k_state, (B, n_inputs), jnp.float32)

    out = jax.block_until_ready(ddpg_actor_forward(state, arrays, **meta))

    ref = reference_forward(state, params)
    assert out.shape == (B, n_actions), out.shape
    assert out.dtype == jnp.bfloat16, out.dtype
    err = float(jnp.max(jnp.abs(out.astype(jnp.float32) - ref)))
    assert jnp.allclose(out.astype(jnp.float32), ref, atol=5e-3, rtol=5e-3), err

    print("KERNEL_OK")
</pallas_src>

<mosaic_0001>
module attributes {stable_mosaic.version = 11 : i64} {
  func.func @ddpg_actor_kernel(%arg0: i32, %arg1: memref<8x32xf32, #tpu.memory_space<vmem>>, %arg2: memref<32x256xbf16, #tpu.memory_space<vmem>>, %arg3: memref<384x128xbf16, #tpu.memory_space<vmem>>, %arg4: memref<1x512xf32, #tpu.memory_space<vmem>>, %arg5: memref<8x128xbf16, #tpu.memory_space<vmem>>) attributes {dimension_semantics = [#tpu.dimension_semantics<parallel>], iteration_bounds = array<i64: 1>, scalar_prefetch = 0 : i64, scratch_operands = 0 : i64, tpu.core_type = #tpu.core_type<tc>, window_params = [{transform_indices = @transform_0, window_bounds = array<i64: 8, 32>}, {pipeline_mode = #tpu.pipeline_mode<synchronous>, transform_indices = @transform_1, window_bounds = array<i64: 32, 256>}, {pipeline_mode = #tpu.pipeline_mode<synchronous>, transform_indices = @transform_2, window_bounds = array<i64: 384, 128>}, {pipeline_mode = #tpu.pipeline_mode<synchronous>, transform_indices = @transform_3, window_bounds = array<i64: 1, 512>}, {transform_indices = @transform_4, window_bounds = array<i64: 8, 128>}]} {
    %c0 = arith.constant 0 : index
    %c0_0 = arith.constant 0 : index
    %0 = vector.load %arg1[%c0, %c0_0] : memref<8x32xf32, #tpu.memory_space<vmem>>, vector<8x32xf32>
    %1 = arith.truncf %0 : vector<8x32xf32> to vector<8x32xbf16>
    %c0_1 = arith.constant 0 : index
    %c0_2 = arith.constant 0 : index
    %2 = vector.load %arg2[%c0_1, %c0_2] : memref<32x256xbf16, #tpu.memory_space<vmem>>, vector<32x256xbf16>
    %cst = arith.constant dense<0.000000e+00> : vector<8x256xf32>
    %3 = tpu.matmul %1, %2, %cst {dimension_numbers = #tpu.dot_dimension_numbers<[1], [0], [0], [1], [0, 0, 1, 1], [], []>} : vector<8x32xbf16>, vector<32x256xbf16>, vector<8x256xf32> -> vector<8x256xf32>
    %c0_3 = arith.constant 0 : index
    %c0_4 = arith.constant 0 : index
    %4 = vector.load %arg4[%c0_3, %c0_4] : memref<1x512xf32, #tpu.memory_space<vmem>>, vector<1x256xf32>
    %5 = vector.broadcast %4 : vector<1x256xf32> to vector<8x256xf32>
    %6 = arith.addf %3, %5 : vector<8x256xf32>
    %cst_5 = arith.constant 0.000000e+00 : f32
    %7 = vector.broadcast %cst_5 : f32 to vector<8x256xf32>
    %8 = arith.maximumf %6, %7 : vector<8x256xf32>
    %c0_6 = arith.constant 0 : index
    %c0_7 = arith.constant 0 : index
    %9 = vector.load %arg3[%c0_6, %c0_7] : memref<384x128xbf16, #tpu.memory_space<vmem>>, vector<256x128xbf16>
    %10 = arith.truncf %8 : vector<8x256xf32> to vector<8x256xbf16>
    %cst_8 = arith.constant dense<0.000000e+00> : vector<8x128xf32>
    %11 = tpu.matmul %10, %9, %cst_8 {dimension_numbers = #tpu.dot_dimension_numbers<[1], [0], [0], [1], [0, 0, 1, 1], [], []>} : vector<8x256xbf16>, vector<256x128xbf16>, vector<8x128xf32> -> vector<8x128xf32>
    %c0_9 = arith.constant 0 : index
    %c256 = arith.constant 256 : index
    %12 = vector.load %arg4[%c0_9, %c256] : memref<1x512xf32, #tpu.memory_space<vmem>>, vector<1x128xf32>
    %13 = vector.broadcast %12 : vector<1x128xf32> to vector<8x128xf32>
    %14 = arith.addf %11, %13 : vector<8x128xf32>
    %cst_10 = arith.constant 0.000000e+00 : f32
    %15 = vector.broadcast %cst_10 : f32 to vector<8x128xf32>
    %16 = arith.maximumf %14, %15 : vector<8x128xf32>
    %c256_11 = arith.constant 256 : index
    %c0_12 = arith.constant 0 : index
    %17 = vector.load %arg3[%c256_11, %c0_12] : memref<384x128xbf16, #tpu.memory_space<vmem>>, vector<128x128xbf16>
    %18 = arith.truncf %16 : vector<8x128xf32> to vector<8x128xbf16>
    %cst_13 = arith.constant dense<0.000000e+00> : vector<8x128xf32>
    %19 = tpu.matmul %18, %17, %cst_13 {dimension_numbers = #tpu.dot_dimension_numbers<[1], [0], [0], [1], [0, 0, 1, 1], [], []>} : vector<8x128xbf16>, vector<128x128xbf16>, vector<8x128xf32> -> vector<8x128xf32>
    %c0_14 = arith.constant 0 : index
    %c384 = arith.constant 384 : index
    %20 = vector.load %arg4[%c0_14, %c384] : memref<1x512xf32, #tpu.memory_space<vmem>>, vector<1x128xf32>
    %21 = vector.broadcast %20 : vector<1x128xf32> to vector<8x128xf32>
    %22 = arith.addf %19, %21 : vector<8x128xf32>
    %23 = math.tanh %22 : vector<8x128xf32>
    %24 = arith.truncf %23 : vector<8x128xf32> to vector<8x128xbf16>
    %c0_15 = arith.constant 0 : index
    %c0_16 = arith.constant 0 : index
    %25 = vector.load %arg5[%c0_15, %c0_16] : memref<8x128xbf16, #tpu.memory_space<vmem>>, vector<8x128xbf16>
    tpu.vector_store %arg5[%c0_15, %c0_16], %24 {strides = array<i32>} : memref<8x128xbf16, #tpu.memory_space<vmem>>, vector<8x128xbf16>,
    return
  }
  func.func @transform_0(%arg0: i32) -> (i32, i32) {
    %c0_i32 = arith.constant 0 : i32
    %c0_i32_0 = arith.constant 0 : i32
    return %arg0, %c0_i32 : i32, i32
  }
  func.func @transform_1(%arg0: i32) -> (i32, i32) {
    %c0_i32 = arith.constant 0 : i32
    %c0_i32_0 = arith.constant 0 : i32
    %c0_i32_1 = arith.constant 0 : i32
    return %c0_i32, %c0_i32_0 : i32, i32
  }
  func.func @transform_2(%arg0: i32) -> (i32, i32) {
    %c0_i32 = arith.constant 0 : i32
    %c0_i32_0 = arith.constant 0 : i32
    %c0_i32_1 = arith.constant 0 : i32
    return %c0_i32, %c0_i32_0 : i32, i32
  }
  func.func @transform_3(%arg0: i32) -> (i32, i32) {
    %c0_i32 = arith.constant 0 : i32
    %c0_i32_0 = arith.constant 0 : i32
    %c0_i32_1 = arith.constant 0 : i32
    return %c0_i32, %c0_i32_0 : i32, i32
  }
  func.func @transform_4(%arg0: i32) -> (i32, i32) {
    %c0_i32 = arith.constant 0 : i32
    %c0_i32_0 = arith.constant 0 : i32
    return %arg0, %c0_i32 : i32, i32
  }
}

</mosaic_0001>

<llo_original>
// kernel: ddpg_actor_forward.1
$region0: #{ddpg_actor_forward.1}
  #allocation0 [shape = 'u32[]', space=smem, size = 0x4, offset = 0x4, fixed_abs, tag = 'smem constant byte address 0x4 - core index']
  #allocation1 [shape = 'u32[144,128]{1,0:T(1,128)}', space=vmem, size = 0x12000, scoped, tag = 'internal scratch']
  %s0 = inlined_call_operand.hbm [shape: f32[8,32], index: 0, kind: input, shape index: {}]
  %s1 = inlined_call_operand.hbm [shape: bf16[32,256], index: 1, kind: input, shape index: {}]
  %s2 = inlined_call_operand.hbm [shape: bf16[384,128], index: 2, kind: input, shape index: {}]
  %s3 = inlined_call_operand.hbm [shape: f32[1,512], index: 3, kind: input, shape index: {}]
  %s4 = inlined_call_operand.hbm [shape: bf16[8,128], index: 4, kind: output, shape index: {}]
  %s5 = sld [smem:[#allocation0]]
  $region42: #{ddpg_actor_forward.1} parent=0
    _
  %s7 = ssub.s32 1, %s5
  %s8 = scalar_select 0, %s7, %s5
  $region1: #{ddpg_actor_forward.1} parent=0
    #allocation2 [shape = 'u8[4096]{0}', space=vmem, size = 0x1000, scoped, tag = 'input window, operand 0, single buffered']
    #allocation3 [shape = 's32[1]{0}', space=sflag, size = 0x4, scoped, tag = 'scoped memory for ddpg_actor_forward.1']
    #allocation4 [shape = 's32[1]{0}', space=sflag, size = 0x4, scoped, tag = 'scoped memory for ddpg_actor_forward.1']
    #allocation5 [shape = 'u8[16384]{0}', space=vmem, size = 0x4000, scoped, tag = 'input window, operand 1, single buffered']
    #allocation6 [shape = 's32[1]{0}', space=sflag, size = 0x4, scoped, tag = 'scoped memory for ddpg_actor_forward.1']
    #allocation7 [shape = 'u8[98304]{0}', space=vmem, size = 0x18000, scoped, tag = 'input window, operand 2, single buffered']
    #allocation8 [shape = 'u8[2048]{0}', space=vmem, size = 0x800, scoped, tag = 'input window, operand 3, single buffered']
    #allocation9 [shape = 's32[1]{0}', space=sflag, size = 0x4, scoped, tag = 'scoped memory for ddpg_actor_forward.1']
    #allocation10 [shape = 'u8[2048]{0}', space=vmem, size = 0x800, scoped, tag = 'output window, operand 0, single buffered']
    %9 = vsyncpa [#allocation3], 0
    %10 = vsyncpa [#allocation6], 0
    %11 = vsyncpa [#allocation9], 0
    %12 = vsyncpa [#allocation4], 0
    // Predicated region
    $region2: #{ddpg_actor_forward.1} parent=1 // pred_check
      _
    $region3: #{ddpg_actor_forward.1} parent=1 // pred_check_branch
      %14 = sbr.rel (0) target = $region5
    $region4: #{ddpg_actor_forward.1} parent=1 // pred_region
      %s16 = ssub.s32 128, 128
      %17 = vsyncadd [#allocation3], %s16
      %s19 = sshll.u32 [#allocation2], 4
      %s20 = int_to_ptr.vmem [resolvable:$true] %s19
      %22 = dma.hbm_to_vmem [thread:$0]  %s0, 128, %s20, [#allocation3]
    $region5: #{ddpg_actor_forward.1} parent=1 // pred_fallthru
      _
    // Predicated region
    $region6: #{ddpg_actor_forward.1} parent=1 // pred_check
      _
    $region7: #{ddpg_actor_forward.1} parent=1 // pred_check_branch
      %24 = sbr.rel (0) target = $region9
    $region8: #{ddpg_actor_forward.1} parent=1 // pred_region
      %s26 = ssub.s32 512, 512
      %27 = vsyncadd [#allocation6], %s26
      %s28 = sshll.u32 [#allocation5], 4
      %s29 = int_to_ptr.vmem [resolvable:$true] %s28
      %34 = dma.hbm_to_vmem [thread:$0]  %s1, 512, %s29, [#allocation6], 128, 128, 8
    $region9: #{ddpg_actor_forward.1} parent=1 // pred_fallthru
      _
    // Predicated region
    $region10: #{ddpg_actor_forward.1} parent=1 // pred_check
      _
    $region11: #{ddpg_actor_forward.1} parent=1 // pred_check_branch
      %36 = sbr.rel (0) target = $region13
    $region12: #{ddpg_actor_forward.1} parent=1 // pred_region
      %s38 = ssub.s32 3072, 3072
      %39 = vsyncadd [#allocation6], %s38
      %s40 = sshll.u32 [#allocation7], 4
      %s41 = int_to_ptr.vmem [resolvable:$true] %s40
      %46 = dma.hbm_to_vmem [thread:$0]  %s2, 3072, %s41, [#allocation6], 64, 64, 4
    $region13: #{ddpg_actor_forward.1} parent=1 // pred_fallthru
      _
    // Predicated region
    $region14: #{ddpg_actor_forward.1} parent=1 // pred_check
      _
    $region15: #{ddpg_actor_forward.1} parent=1 // pred_check_branch
      %48 = sbr.rel (0) target = $region17
    $region16: #{ddpg_actor_forward.1} parent=1 // pred_region
      %s50 = ssub.s32 64, 64
      %51 = vsyncadd [#allocation9], %s50
      %s53 = sshll.u32 [#allocation8], 4
      %s54 = int_to_ptr.vmem [resolvable:$true] %s53
      %56 = dma.hbm_to_vmem [thread:$0]  %s3, 64, %s54, [#allocation9]
    $region17: #{ddpg_actor_forward.1} parent=1 // pred_fallthru
      _
    // Predicated region
    $region18: #{ddpg_actor_forward.1} parent=1 // pred_check
      _
    $region19: #{ddpg_actor_forward.1} parent=1 // pred_check_branch
      %58 = sbr.rel (0) target = $region21
    $region20: #{ddpg_actor_forward.1} parent=1 // pred_region
      %59 = dma.done [#allocation3], 128
    $region21: #{ddpg_actor_forward.1} parent=1 // pred_fallthru
      _
    // Predicated region
    $region22: #{ddpg_actor_forward.1} parent=1 // pred_check
      _
    $region23: #{ddpg_actor_forward.1} parent=1 // pred_check_branch
      %61 = sbr.rel (0) target = $region25
    $region24: #{ddpg_actor_forward.1} parent=1 // pred_region
      %62 = dma.done [#allocation6], 512
    $region25: #{ddpg_actor_forward.1} parent=1 // pred_fallthru
      _
    // Predicated region
    $region26: #{ddpg_actor_forward.1} parent=1 // pred_check
      _
    $region27: #{ddpg_actor_forward.1} parent=1 // pred_check_branch
      %64 = sbr.rel (0) target = $region29
    $region28: #{ddpg_actor_forward.1} parent=1 // pred_region
      %65 = dma.done [#allocation6], 3072
    $region29: #{ddpg_actor_forward.1} parent=1 // pred_fallthru
      _
    // Predicated region
    $region30: #{ddpg_actor_forward.1} parent=1 // pred_check
      _
    $region31: #{ddpg_actor_forward.1} parent=1 // pred_check_branch
      %67 = sbr.rel (0) target = $region33
    $region32: #{ddpg_actor_forward.1} parent=1 // pred_region
      %68 = dma.done [#allocation9], 64
    $region33: #{ddpg_actor_forward.1} parent=1 // pred_fallthru
      _
    %v70 = vld [vmem:[#allocation2] sm:$0xff]
    %v71 = vpack.c.bf16 %v70, %v70
    %v72 = vld [vmem:[#allocation5] sm:$0xff]
    %v73 = vld [vmem:[#allocation5 + $0x8] sm:$0xff]
    %v74 = vld [vmem:[#allocation5 + $0x10] sm:$0xff]
    %v75 = vld [vmem:[#allocation5 + $0x18] sm:$0xff]
    %v76 = vld [vmem:[#allocation8] sm:$0x3]
    %v78 = vlaneseq
    %v79 = vshrl.u32 %v78, 7
    %v80 = vsub.s32 0, %v79
    %v81 = vrot.slane %v76, %v80
    %v82 = vlaneseq
    %v83 = vshrl.u32 %v82, 7
    %v84 = vsub.s32 1, %v83
    %v85 = vrot.slane %v76, %v84
    %v92 = vunpack.c.l.b16 %v72
    %v93 = vunpack.c.h.b16 %v72
    %v94 = vunpack.c.l.b16 %v73
    %v95 = vunpack.c.h.b16 %v73
    %v96 = vunpack.c.l.b16 %v74
    %v97 = vunpack.c.h.b16 %v74
    %v98 = vunpack.c.l.b16 %v75
    %v99 = vunpack.c.h.b16 %v75
    %v100 = vpack.c.b16 %v94, %v92
    %v101 = vpack.c.b16 %v95, %v93
    %v102 = vpack.c.b16 %v98, %v96
    %v103 = vpack.c.b16 %v99, %v97
    %vm108 = vcmask 261120
    %v110 = vsel %vm108, %v71, 0
    %112 = vmatprep.subr.bf16.mxu0 0
    %113 = vmatpush1.bf16.msra.mxu0 0
    %114 = vmatprep.subr.bf16.mxu0 0
    %115 = vmatpush1.bf16.msra.mxu0 0
    %116 = vmatprep.subr.bf16.mxu0 0
    %117 = vmatpush1.bf16.msra.mxu0 0
    %118 = vmatprep.subr.bf16.mxu0 0
    %119 = vmatpush1.bf16.msra.mxu0 0
    %120 = vmatprep.subr.bf16.mxu0 0
    %121 = vmatpush1.bf16.msra.mxu0 0
    %122 = vmatprep.subr.bf16.mxu0 0
    %123 = vmatpush1.bf16.msra.mxu0 0
    %124 = vmatprep.subr.bf16.mxu0 %v103
    %125 = vmatpush1.bf16.msra.mxu0 %v102
    %126 = vmatprep.subr.bf16.mxu0 %v101
    %127 = vmatpush1.bf16.msra.mxu0 %v100
    %128 = vmatprep.subr.bf16.mxu0 0
    %129 = vmatpush2.bf16.msra.mxu0 0
    %130 = vmatprep.subr.bf16.mxu0 0
    %131 = vmatpush2.bf16.msra.mxu0 0
    %132 = vmatprep.subr.bf16.mxu0 0
    %133 = vmatpush2.bf16.msra.mxu0 0
    %134 = vmatprep.subr.bf16.mxu0 0
    %135 = vmatpush2.bf16.msra.mxu0 0
    %136 = vmatprep.subr.bf16.mxu0 0
    %137 = vmatpush2.bf16.msra.mxu0 0
    %138 = vmatprep.subr.bf16.mxu0 0
    %139 = vmatpush2.bf16.msra.mxu0 0
    %140 = vmatprep.subr.bf16.mxu0 0
    %141 = vmatpush2.bf16.msra.mxu0 0
    %142 = vmatprep.subr.bf16.mxu0 0
    %143 = vmatpush2.bf16.msra.mxu0 0
    %144 = vmatprep.mubr.bf16.mxu0 0
    %145 = vmatmul.mubr.bf16.gmra.mxu0 %v110
    %v146 = vpop.f32.mrf.mxu0
    %v147 = vadd.f32 %v81, %v146
    %v148 = vpop.f32.mrf.mxu0
    %v149 = vadd.f32 %v85, %v148
    %v150 = vpop.f32.mrf.mxu0
    %v151 = vpop.f32.mrf.mxu0
    %152 = vdwg.mxu0
    %v153 = vmax.f32 %v147, 0.0
    %v154 = vmax.f32 %v149, 0.0
    %v155 = vld [vmem:[#allocation7] sm:$0xf]
    %v156 = vld [vmem:[#allocation7 + $0x4] sm:$0xf]
    %v157 = vld [vmem:[#allocation7 + $0x8] sm:$0xf]
    %v158 = vld [vmem:[#allocation7 + $0xc] sm:$0xf]
    %v159 = vld [vmem:[#allocation7 + $0x10] sm:$0xf]
    %v160 = vld [vmem:[#allocation7 + $0x14] sm:$0xf]
    %v161 = vld [vmem:[#allocation7 + $0x18] sm:$0xf]
    %v162 = vld [vmem:[#allocation7 + $0x1c] sm:$0xf]
    %v163 = vld [vmem:[#allocation7 + $0x20] sm:$0xf]
    %v164 = vld [vmem:[#allocation7 + $0x24] sm:$0xf]
    %v165 = vld [vmem:[#allocation7 + $0x28] sm:$0xf]
    %v166 = vld [vmem:[#allocation7 + $0x2c] sm:$0xf]
    %v167 = vld [vmem:[#allocation7 + $0x30] sm:$0xf]
    %v168 = vld [vmem:[#allocation7 + $0x34] sm:$0xf]
    %v169 = vld [vmem:[#allocation7 + $0x38] sm:$0xf]
    %v170 = vld [vmem:[#allocation7 + $0x3c] sm:$0xf]
    %v171 = vld [vmem:[#allocation7 + $0x40] sm:$0xf]
    %v172 = vld [vmem:[#allocation7 + $0x44] sm:$0xf]
    %v173 = vld [vmem:[#allocation7 + $0x48] sm:$0xf]
    %v174 = vld [vmem:[#allocation7 + $0x4c] sm:$0xf]
    %v175 = vld [vmem:[#allocation7 + $0x50] sm:$0xf]
    %v176 = vld [vmem:[#allocation7 + $0x54] sm:$0xf]
    %v177 = vld [vmem:[#allocation7 + $0x58] sm:$0xf]
    %v178 = vld [vmem:[#allocation7 + $0x5c] sm:$0xf]
    %v179 = vld [vmem:[#allocation7 + $0x60] sm:$0xf]
    %v180 = vld [vmem:[#allocation7 + $0x64] sm:$0xf]
    %v181 = vld [vmem:[#allocation7 + $0x68] sm:$0xf]
    %v182 = vld [vmem:[#allocation7 + $0x6c] sm:$0xf]
    %v183 = vld [vmem:[#allocation7 + $0x70] sm:$0xf]
    %v184 = vld [vmem:[#allocation7 + $0x74] sm:$0xf]
    %v185 = vld [vmem:[#allocation7 + $0x78] sm:$0xf]
    %v186 = vld [vmem:[#allocation7 + $0x7c] sm:$0xf]
    %v187 = vpack.c.bf16 %v153, %v153
    %v188 = vpack.c.bf16 %v154, %v154
    %v189 = vld [vmem:[#allocation8 + $0x2] sm:$0x1]
    %v191 = vlaneseq
    %v192 = vshrl.u32 %v191, 7
    %v193 = vsub.s32 0, %v192
    %v194 = vrot.slane %v189, %v193
    %v228 = vunpack.c.l.b16 %v155
    %v229 = vunpack.c.l.b16 %v156
    %v230 = vunpack.c.l.b16 %v157
    %v231 = vunpack.c.l.b16 %v158
    %v232 = vunpack.c.l.b16 %v159
    %v233 = vunpack.c.l.b16 %v160
    %v234 = vunpack.c.l.b16 %v161
    %v235 = vunpack.c.l.b16 %v162
    %v236 = vunpack.c.l.b16 %v163
    %v237 = vunpack.c.l.b16 %v164
    %v238 = vunpack.c.l.b16 %v165
    %v239 = vunpack.c.l.b16 %v166
    %v240 = vunpack.c.l.b16 %v167
    %v241 = vunpack.c.l.b16 %v168
    %v242 = vunpack.c.l.b16 %v169
    %v243 = vunpack.c.l.b16 %v170
    %v244 = vunpack.c.l.b16 %v171
    %v245 = vunpack.c.l.b16 %v172
    %v246 = vunpack.c.l.b16 %v173
    %v247 = vunpack.c.l.b16 %v174
    %v248 = vunpack.c.l.b16 %v175
    %v249 = vunpack.c.l.b16 %v176
    %v250 = vunpack.c.l.b16 %v177
    %v251 = vunpack.c.l.b16 %v178
    %v252 = vunpack.c.l.b16 %v179
    %v253 = vunpack.c.l.b16 %v180
    %v254 = vunpack.c.l.b16 %v181
    %v255 = vunpack.c.l.b16 %v182
    %v256 = vunpack.c.l.b16 %v183
    %v257 = vunpack.c.l.b16 %v184
    %v258 = vunpack.c.l.b16 %v185
    %v259 = vunpack.c.l.b16 %v186
    %v260 = vpack.c.b16 %v229, %v228
    %v261 = vpack.c.b16 %v231, %v230
    %v262 = vpack.c.b16 %v233, %v232
    %v263 = vpack.c.b16 %v235, %v234
    %v264 = vpack.c.b16 %v237, %v236
    %v265 = vpack.c.b16 %v239, %v238
    %v266 = vpack.c.b16 %v241, %v240
    %v267 = vpack.c.b16 %v243, %v242
    %v268 = vpack.c.b16 %v245, %v244
    %v269 = vpack.c.b16 %v247, %v246
    %v270 = vpack.c.b16 %v249, %v248
    %v271 = vpack.c.b16 %v251, %v250
    %v272 = vpack.c.b16 %v253, %v252
    %v273 = vpack.c.b16 %v255, %v254
    %v274 = vpack.c.b16 %v257, %v256
    %v275 = vpack.c.b16 %v259, %v258
    %292 = vmatprep.subr.bf16.mxu0 0
    %293 = vmatpush1.bf16.msra.mxu0 %v267
    %294 = vmatprep.subr.bf16.mxu0 0
    %295 = vmatpush1.bf16.msra.mxu0 %v266
    %296 = vmatprep.subr.bf16.mxu0 0
    %297 = vmatpush1.bf16.msra.mxu0 %v265
    %298 = vmatprep.subr.bf16.mxu0 0
    %299 = vmatpush1.bf16.msra.mxu0 %v264
    %300 = vmatprep.subr.bf16.mxu0 0
    %301 = vmatpush1.bf16.msra.mxu0 %v263
    %302 = vmatprep.subr.bf16.mxu0 0
    %303 = vmatpush1.bf16.msra.mxu0 %v262
    %304 = vmatprep.subr.bf16.mxu0 0
    %305 = vmatpush1.bf16.msra.mxu0 %v261
    %306 = vmatprep.subr.bf16.mxu0 0
    %307 = vmatpush1.bf16.msra.mxu0 %v260
    %308 = vmatprep.subr.bf16.mxu0 0
    %309 = vmatpush2.bf16.msra.mxu0 %v275
    %310 = vmatprep.subr.bf16.mxu0 0
    %311 = vmatpush2.bf16.msra.mxu0 %v274
    %312 = vmatprep.subr.bf16.mxu0 0
    %313 = vmatpush2.bf16.msra.mxu0 %v273
    %314 = vmatprep.subr.bf16.mxu0 0
    %315 = vmatpush2.bf16.msra.mxu0 %v272
    %316 = vmatprep.subr.bf16.mxu0 0
    %317 = vmatpush2.bf16.msra.mxu0 %v271
    %318 = vmatprep.subr.bf16.mxu0 0
    %319 = vmatpush2.bf16.msra.mxu0 %v270
    %320 = vmatprep.subr.bf16.mxu0 0
    %321 = vmatpush2.bf16.msra.mxu0 %v269
    %322 = vmatprep.subr.bf16.mxu0 0
    %323 = vmatpush2.bf16.msra.mxu0 %v268
    %324 = vmatprep.mubr.bf16.mxu0 %v188
    %325 = vmatmul.mubr.bf16.gmra.mxu0 %v187
    %v326 = vpop.f32.mrf.mxu0
    %v327 = vadd.f32 %v194, %v326
    %v328 = vpop.f32.mrf.mxu0
    %v329 = vpop.f32.mrf.mxu0
    %v330 = vpop.f32.mrf.mxu0
    %331 = vdwg.mxu0
    %v332 = vmax.f32 %v327, 0.0
    %v333 = vld [vmem:[#allocation7 + $0x80] sm:$0xf]
    %v334 = vld [vmem:[#allocation7 + $0x84] sm:$0xf]
    %v335 = vld [vmem:[#allocation7 + $0x88] sm:$0xf]
    %v336 = vld [vmem:[#allocation7 + $0x8c] sm:$0xf]
    %v337 = vld [vmem:[#allocation7 + $0x90] sm:$0xf]
    %v338 = vld [vmem:[#allocation7 + $0x94] sm:$0xf]
    %v339 = vld [vmem:[#allocation7 + $0x98] sm:$0xf]
    %v340 = vld [vmem:[#allocation7 + $0x9c] sm:$0xf]
    %v341 = vld [vmem:[#allocation7 + $0xa0] sm:$0xf]
    %v342 = vld [vmem:[#allocation7 + $0xa4] sm:$0xf]
    %v343 = vld [vmem:[#allocation7 + $0xa8] sm:$0xf]
    %v344 = vld [vmem:[#allocation7 + $0xac] sm:$0xf]
    %v345 = vld [vmem:[#allocation7 + $0xb0] sm:$0xf]
    %v346 = vld [vmem:[#allocation7 + $0xb4] sm:$0xf]
    %v347 = vld [vmem:[#allocation7 + $0xb8] sm:$0xf]
    %v348 = vld [vmem:[#allocation7 + $0xbc] sm:$0xf]
    %v349 = vpack.c.bf16 %v332, %v332
    %v350 = vld [vmem:[#allocation8 + $0x3] sm:$0x1]
    %v352 = vlaneseq
    %v353 = vshrl.u32 %v352, 7
    %v354 = vsub.s32 0, %v353
    %v355 = vrot.slane %v350, %v354
    %v373 = vunpack.c.l.b16 %v333
    %v374 = vunpack.c.l.b16 %v334
    %v375 = vunpack.c.l.b16 %v335
    %v376 = vunpack.c.l.b16 %v336
    %v377 = vunpack.c.l.b16 %v337
    %v378 = vunpack.c.l.b16 %v338
    %v379 = vunpack.c.l.b16 %v339
    %v380 = vunpack.c.l.b16 %v340
    %v381 = vunpack.c.l.b16 %v341
    %v382 = vunpack.c.l.b16 %v342
    %v383 = vunpack.c.l.b16 %v343
    %v384 = vunpack.c.l.b16 %v344
    %v385 = vunpack.c.l.b16 %v345
    %v386 = vunpack.c.l.b16 %v346
    %v387 = vunpack.c.l.b16 %v347
    %v388 = vunpack.c.l.b16 %v348
    %v389 = vpack.c.b16 %v374, %v373
    %v390 = vpack.c.b16 %v376, %v375
    %v391 = vpack.c.b16 %v378, %v377
    %v392 = vpack.c.b16 %v380, %v379
    %v393 = vpack.c.b16 %v382, %v381
    %v394 = vpack.c.b16 %v384, %v383
    %v395 = vpack.c.b16 %v386, %v385
    %v396 = vpack.c.b16 %v388, %v387
    %405 = vmatprep.subr.bf16.mxu0 0
    %406 = vmatpush1.bf16.msra.mxu0 %v396
    %407 = vmatprep.subr.bf16.mxu0 0
    %408 = vmatpush1.bf16.msra.mxu0 %v395
    %409 = vmatprep.subr.bf16.mxu0 0
    %410 = vmatpush1.bf16.msra.mxu0 %v394
    %411 = vmatprep.subr.bf16.mxu0 0
    %412 = vmatpush1.bf16.msra.mxu0 %v393
    %413 = vmatprep.subr.bf16.mxu0 0
    %414 = vmatpush1.bf16.msra.mxu0 %v392
    %415 = vmatprep.subr.bf16.mxu0 0
    %416 = vmatpush1.bf16.msra.mxu0 %v391
    %417 = vmatprep.subr.bf16.mxu0 0
    %418 = vmatpush1.bf16.msra.mxu0 %v390
    %419 = vmatprep.subr.bf16.mxu0 0
    %420 = vmatpush1.bf16.msra.mxu0 %v389
    %421 = vmatprep.subr.bf16.mxu0 0
    %422 = vmatpush2.bf16.msra.mxu0 0
    %423 = vmatprep.subr.bf16.mxu0 0
    %424 = vmatpush2.bf16.msra.mxu0 0
    %425 = vmatprep.subr.bf16.mxu0 0
    %426 = vmatpush2.bf16.msra.mxu0 0
    %427 = vmatprep.subr.bf16.mxu0 0
    %428 = vmatpush2.bf16.msra.mxu0 0
    %429 = vmatprep.subr.bf16.mxu0 0
    %430 = vmatpush2.bf16.msra.mxu0 0
    %431 = vmatprep.subr.bf16.mxu0 0
    %432 = vmatpush2.bf16.msra.mxu0 0
    %433 = vmatprep.subr.bf16.mxu0 0
    %434 = vmatpush2.bf16.msra.mxu0 0
    %435 = vmatprep.subr.bf16.mxu0 0
    %436 = vmatpush2.bf16.msra.mxu0 0
    %437 = vmatprep.mubr.bf16.mxu0 0
    %438 = vmatmul.mubr.bf16.gmra.mxu0 %v349
    %v439 = vpop.f32.mrf.mxu0
    %v440 = vadd.f32 %v355, %v439
    %v441 = vpop.f32.mrf.mxu0
    %v442 = vpop.f32.mrf.mxu0
    %v443 = vpop.f32.mrf.mxu0
    %444 = vdwg.mxu0
    %v445 = vtanh.pop %v440
    %v446 = vpack.c.bf16 %v445, %v445
    %447 = vst [vmem:[#allocation10] sm:$0xf] %v446
    // Predicated region
    $region34: #{ddpg_actor_forward.1} parent=1 // pred_check
      _
    $region35: #{ddpg_actor_forward.1} parent=1 // pred_check_branch
      %449 = sbr.rel (0) target = $region37
    $region36: #{ddpg_actor_forward.1} parent=1 // pred_region
      %s451 = ssub.s32 64, 64
      %452 = vsyncadd [#allocation4], %s451
      %s454 = sshll.u32 [#allocation10], 4
      %s455 = int_to_ptr.vmem [resolvable:$true] %s454
      %457 = dma.vmem_to_hbm [thread:$0]  %s455, 64, %s4, [#allocation4]
    $region37: #{ddpg_actor_forward.1} parent=1 // pred_fallthru
      _
    // Predicated region
    $region38: #{ddpg_actor_forward.1} parent=1 // pred_check
      _
    $region39: #{ddpg_actor_forward.1} parent=1 // pred_check_branch
      %459 = sbr.rel (0) target = $region41
    $region40: #{ddpg_actor_forward.1} parent=1 // pred_region
      %460 = dma.done [#allocation4], 64
    $region41: #{ddpg_actor_forward.1} parent=1 // pred_fallthru
      _
    %461 = vsyncpa [#allocation3], 1
    %462 = vsyncpa [#allocation6], 1
    %463 = vsyncpa [#allocation9], 1
    %464 = vsyncpa [#allocation4], 1

</llo_original>
